<compile_context>
chip_gen: v6e
topology: v6e:2x2x1
jax: 0.10.0
libtpu: 0.0.40
codegen_flags: <defaults>
</compile_context>

<pallas_src>
import functools

import jax
import jax.numpy as jnp
from jax.experimental import pallas as pl
from jax.experimental.pallas import tpu as pltpu

LANE = 128  # TPU lane width: hidden/output feature dim is padded to a multiple.


def _round_up(x, m):
    return (x + m - 1) // m * m


def lower_layers_kernel(x_ref, w0_ref, b0_ref, w1_ref, b1_ref,
                        w2_ref, b2_ref, w3_ref, b3_ref, o_ref):
    """Fused 4 x (Linear -> tanh) over one batch tile, all operands in VMEM."""
    cdt = w0_ref.dtype  # compute dtype of the MXU inputs (bf16 on v6e/v7x, f32 on v5e)

    # Hoist bias loads once (avoid per-expression re-broadcast).
    b0 = b0_ref[...]
    b1 = b1_ref[...]
    b2 = b2_ref[...]
    b3 = b3_ref[...]

    x = x_ref[...].astype(cdt)
    h = jnp.tanh(jnp.dot(x, w0_ref[...], preferred_element_type=jnp.float32) + b0)
    h = jnp.tanh(jnp.dot(h.astype(cdt), w1_ref[...],
                         preferred_element_type=jnp.float32) + b1)
    h = jnp.tanh(jnp.dot(h.astype(cdt), w2_ref[...],
                         preferred_element_type=jnp.float32) + b2)
    h = jnp.tanh(jnp.dot(h.astype(cdt), w3_ref[...],
                         preferred_element_type=jnp.float32) + b3)
    o_ref[...] = h.astype(o_ref.dtype)


@functools.partial(jax.jit, static_argnames=("block_b", "compute_dtype"))
def lower_layers_forward(x, params, block_b=512, compute_dtype=jnp.float32):
    """x: (B, n_in) f32. params: dict of (in, out) weights and (1, out) biases.

    Returns tanh(...tanh(x @ w0 + b0)... @ w3 + b3) as (B, H) f32.
    """
    B, n_in = x.shape
    H = params["w0"].shape[1]
    Hp = _round_up(H, LANE)

    # --- lane-pad the hidden/output dim to 128 and cast weights --------------
    def pad_to(a, shape):
        return jnp.pad(a, [(0, t - s) for s, t in zip(a.shape, shape)])

    w0 = pad_to(params["w0"], (n_in, Hp)).astype(compute_dtype)
    w1 = pad_to(params["w1"], (Hp, Hp)).astype(compute_dtype)
    w2 = pad_to(params["w2"], (Hp, Hp)).astype(compute_dtype)
    w3 = pad_to(params["w3"], (Hp, Hp)).astype(compute_dtype)
    # Biases stay f32: they are added to the f32 MXU accumulator.
    b0 = pad_to(params["b0"], (1, Hp))
    b1 = pad_to(params["b1"], (1, Hp))
    b2 = pad_to(params["b2"], (1, Hp))
    b3 = pad_to(params["b3"], (1, Hp))

    # --- batch tiling ---------------------------------------------------------
    # Big batch tile (multiple of 8) amortizes per-grid-step overhead; capped so
    # tiny batches still give a legal >=8-row block.  Ragged last tile is fine:
    # rows are independent, out-of-range output rows are dropped by Pallas.
    bb = max(8, min(_round_up(block_b, 8), _round_up(B, 8)))
    grid = (pl.cdiv(B, bb),)

    # Weights / biases: whole-array, single VMEM buffer (block index never
    # changes across the grid) -> no double-buffering, no per-step re-DMA.
    # At Hp=128 (even a few K) this is far below VMEM limits; if H grows into
    # the multi-thousand range on v7x (64 MiB VMEM), raise vmem_limit_bytes via
    # pltpu.CompilerParams or add a K/N tiling grid axis.
    resident = pl.BlockSpec(memory_space=pltpu.MemorySpace.VMEM)

    out_padded = pl.pallas_call(
        lower_layers_kernel,
        out_shape=jax.ShapeDtypeStruct((B, Hp), jnp.float32),
        grid=grid,
        in_specs=[
            pl.BlockSpec((bb, n_in), lambda i: (i, 0)),  # x batch tile
            resident, resident,                          # layer 0: w0, b0
            resident, resident,                          # layer 1
            resident, resident,                          # layer 2
            resident, resident,                          # layer 3
        ],
        out_specs=pl.BlockSpec((bb, Hp), lambda i: (i, 0)),
        compiler_params=pltpu.CompilerParams(
            # Batch axis is parallel -> shards across v7x's 2 TensorCores
            # whenever grid[0] >= 2 (i.e. block_b < B).
            dimension_semantics=("parallel",)),
    )(x, w0, b0, w1, b1, w2, b2, w3, b3)

    return out_padded[:, :H]


def pick_compute_dtype():
    """bf16 MXU/VPU inputs on v6e/v7x; f32 on v5e and older (no bf16 VPU/EUP)."""
    kind = jax.devices()[0].device_kind.lower()
    if "v6" in kind or "v7" in kind:
        return jnp.bfloat16
    return jnp.float32


def init_params(key, n_in, H):
    """Deterministic init mirroring torch.nn.Linear default (U[-1/sqrt(fan_in), +])."""
    ks = jax.random.split(key, 8)

    def lin(kw, kb, fan_in, fan_out):
        bound = 1.0 / jnp.sqrt(jnp.float32(fan_in))
        w = jax.random.uniform(kw, (fan_in, fan_out), jnp.float32, -bound, bound)
        b = jax.random.uniform(kb, (1, fan_out), jnp.float32, -bound, bound)
        return w, b

    w0, b0 = lin(ks[0], ks[1], n_in, H)
    w1, b1 = lin(ks[2], ks[3], H, H)
    w2, b2 = lin(ks[4], ks[5], H, H)
    w3, b3 = lin(ks[6], ks[7], H, H)
    return {"w0": w0, "b0": b0, "w1": w1, "b1": b1,
            "w2": w2, "b2": b2, "w3": w3, "b3": b3}


def reference_forward(x, p):
    h = jnp.tanh(x @ p["w0"] + p["b0"])
    h = jnp.tanh(h @ p["w1"] + p["b1"])
    h = jnp.tanh(h @ p["w2"] + p["b2"])
    h = jnp.tanh(h @ p["w3"] + p["b3"])
    return h


if __name__ == "__main__":
    key = jax.random.PRNGKey(0)
    k_x, k_p = jax.random.split(key)

    B, n_in, H = 256, 16, 32
    x = jax.random.normal(k_x, (B, n_in), jnp.float32)
    params = init_params(k_p, n_in, H)

    compute_dtype = pick_compute_dtype()
    # block_b=128 -> grid=(2,) so both v7x TensorCores get work even at this
    # small test batch; production batches can keep the 512 default.
    out = lower_layers_forward(x, params, block_b=128, compute_dtype=compute_dtype)
    out = jax.block_until_ready(out)

    ref = reference_forward(x, params)
    assert out.shape == (B, H)
    tol = 1e-5 if compute_dtype is jnp.float32 else 2e-2
    assert jnp.allclose(out, ref, atol=tol, rtol=tol), \
        float(jnp.max(jnp.abs(out - ref)))

    print("KERNEL_OK")
</pallas_src>

<mosaic_0001>
module attributes {stable_mosaic.version = 11 : i64} {
  func.func @lower_layers_kernel(%arg0: i32, %arg1: memref<128x16xf32, #tpu.memory_space<vmem>>, %arg2: memref<16x128xf32, #tpu.memory_space<vmem>>, %arg3: memref<1x128xf32, #tpu.memory_space<vmem>>, %arg4: memref<128x128xf32, #tpu.memory_space<vmem>>, %arg5: memref<1x128xf32, #tpu.memory_space<vmem>>, %arg6: memref<128x128xf32, #tpu.memory_space<vmem>>, %arg7: memref<1x128xf32, #tpu.memory_space<vmem>>, %arg8: memref<128x128xf32, #tpu.memory_space<vmem>>, %arg9: memref<1x128xf32, #tpu.memory_space<vmem>>, %arg10: memref<128x128xf32, #tpu.memory_space<vmem>>) attributes {dimension_semantics = [#tpu.dimension_semantics<parallel>], iteration_bounds = array<i64: 2>, scalar_prefetch = 0 : i64, scratch_operands = 0 : i64, tpu.core_type = #tpu.core_type<tc>, window_params = [{transform_indices = @transform_0, window_bounds = array<i64: 128, 16>}, {pipeline_mode = #tpu.pipeline_mode<synchronous>, transform_indices = @transform_1, window_bounds = array<i64: 16, 128>}, {pipeline_mode = #tpu.pipeline_mode<synchronous>, transform_indices = @transform_2, window_bounds = array<i64: 1, 128>}, {pipeline_mode = #tpu.pipeline_mode<synchronous>, transform_indices = @transform_3, window_bounds = array<i64: 128, 128>}, {pipeline_mode = #tpu.pipeline_mode<synchronous>, transform_indices = @transform_4, window_bounds = array<i64: 1, 128>}, {pipeline_mode = #tpu.pipeline_mode<synchronous>, transform_indices = @transform_5, window_bounds = array<i64: 128, 128>}, {pipeline_mode = #tpu.pipeline_mode<synchronous>, transform_indices = @transform_6, window_bounds = array<i64: 1, 128>}, {pipeline_mode = #tpu.pipeline_mode<synchronous>, transform_indices = @transform_7, window_bounds = array<i64: 128, 128>}, {pipeline_mode = #tpu.pipeline_mode<synchronous>, transform_indices = @transform_8, window_bounds = array<i64: 1, 128>}, {transform_indices = @transform_9, window_bounds = array<i64: 128, 128>}]} {
    %c0 = arith.constant 0 : index
    %c0_0 = arith.constant 0 : index
    %0 = vector.load %arg3[%c0, %c0_0] : memref<1x128xf32, #tpu.memory_space<vmem>>, vector<1x128xf32>
    %c0_1 = arith.constant 0 : index
    %c0_2 = arith.constant 0 : index
    %1 = vector.load %arg5[%c0_1, %c0_2] : memref<1x128xf32, #tpu.memory_space<vmem>>, vector<1x128xf32>
    %c0_3 = arith.constant 0 : index
    %c0_4 = arith.constant 0 : index
    %2 = vector.load %arg7[%c0_3, %c0_4] : memref<1x128xf32, #tpu.memory_space<vmem>>, vector<1x128xf32>
    %c0_5 = arith.constant 0 : index
    %c0_6 = arith.constant 0 : index
    %3 = vector.load %arg9[%c0_5, %c0_6] : memref<1x128xf32, #tpu.memory_space<vmem>>, vector<1x128xf32>
    %c0_7 = arith.constant 0 : index
    %c0_8 = arith.constant 0 : index
    %4 = vector.load %arg1[%c0_7, %c0_8] : memref<128x16xf32, #tpu.memory_space<vmem>>, vector<128x16xf32>
    %c0_9 = arith.constant 0 : index
    %c0_10 = arith.constant 0 : index
    %5 = vector.load %arg2[%c0_9, %c0_10] : memref<16x128xf32, #tpu.memory_space<vmem>>, vector<16x128xf32>
    %cst = arith.constant dense<0.000000e+00> : vector<128x128xf32>
    %6 = tpu.matmul %4, %5, %cst {dimension_numbers = #tpu.dot_dimension_numbers<[1], [0], [0], [1], [0, 0, 1, 1], [], []>} : vector<128x16xf32>, vector<16x128xf32>, vector<128x128xf32> -> vector<128x128xf32>
    %7 = vector.broadcast %0 : vector<1x128xf32> to vector<128x128xf32>
    %8 = arith.addf %6, %7 : vector<128x128xf32>
    %9 = math.tanh %8 : vector<128x128xf32>
    %c0_11 = arith.constant 0 : index
    %c0_12 = arith.constant 0 : index
    %10 = vector.load %arg4[%c0_11, %c0_12] : memref<128x128xf32, #tpu.memory_space<vmem>>, vector<128x128xf32>
    %cst_13 = arith.constant dense<0.000000e+00> : vector<128x128xf32>
    %11 = tpu.matmul %9, %10, %cst_13 {dimension_numbers = #tpu.dot_dimension_numbers<[1], [0], [0], [1], [0, 0, 1, 1], [], []>} : vector<128x128xf32>, vector<128x128xf32>, vector<128x128xf32> -> vector<128x128xf32>
    %12 = vector.broadcast %1 : vector<1x128xf32> to vector<128x128xf32>
    %13 = arith.addf %11, %12 : vector<128x128xf32>
    %14 = math.tanh %13 : vector<128x128xf32>
    %c0_14 = arith.constant 0 : index
    %c0_15 = arith.constant 0 : index
    %15 = vector.load %arg6[%c0_14, %c0_15] : memref<128x128xf32, #tpu.memory_space<vmem>>, vector<128x128xf32>
    %cst_16 = arith.constant dense<0.000000e+00> : vector<128x128xf32>
    %16 = tpu.matmul %14, %15, %cst_16 {dimension_numbers = #tpu.dot_dimension_numbers<[1], [0], [0], [1], [0, 0, 1, 1], [], []>} : vector<128x128xf32>, vector<128x128xf32>, vector<128x128xf32> -> vector<128x128xf32>
    %17 = vector.broadcast %2 : vector<1x128xf32> to vector<128x128xf32>
    %18 = arith.addf %16, %17 : vector<128x128xf32>
    %19 = math.tanh %18 : vector<128x128xf32>
    %c0_17 = arith.constant 0 : index
    %c0_18 = arith.constant 0 : index
    %20 = vector.load %arg8[%c0_17, %c0_18] : memref<128x128xf32, #tpu.memory_space<vmem>>, vector<128x128xf32>
    %cst_19 = arith.constant dense<0.000000e+00> : vector<128x128xf32>
    %21 = tpu.matmul %19, %20, %cst_19 {dimension_numbers = #tpu.dot_dimension_numbers<[1], [0], [0], [1], [0, 0, 1, 1], [], []>} : vector<128x128xf32>, vector<128x128xf32>, vector<128x128xf32> -> vector<128x128xf32>
    %22 = vector.broadcast %3 : vector<1x128xf32> to vector<128x128xf32>
    %23 = arith.addf %21, %22 : vector<128x128xf32>
    %24 = math.tanh %23 : vector<128x128xf32>
    %c0_20 = arith.constant 0 : index
    %c0_21 = arith.constant 0 : index
    %25 = vector.load %arg10[%c0_20, %c0_21] : memref<128x128xf32, #tpu.memory_space<vmem>>, vector<128x128xf32>
    tpu.vector_store %arg10[%c0_20, %c0_21], %24 {strides = array<i32>} : memref<128x128xf32, #tpu.memory_space<vmem>>, vector<128x128xf32>,
    return
  }
  func.func @transform_0(%arg0: i32) -> (i32, i32) {
    %c0_i32 = arith.constant 0 : i32
    %c0_i32_0 = arith.constant 0 : i32
    return %arg0, %c0_i32 : i32, i32
  }
  func.func @transform_1(%arg0: i32) -> (i32, i32) {
    %c0_i32 = arith.constant 0 : i32
    %c0_i32_0 = arith.constant 0 : i32
    %c0_i32_1 = arith.constant 0 : i32
    return %c0_i32, %c0_i32_0 : i32, i32
  }
  func.func @transform_2(%arg0: i32) -> (i32, i32) {
    %c0_i32 = arith.constant 0 : i32
    %c0_i32_0 = arith.constant 0 : i32
    %c0_i32_1 = arith.constant 0 : i32
    return %c0_i32, %c0_i32_0 : i32, i32
  }
  func.func @transform_3(%arg0: i32) -> (i32, i32) {
    %c0_i32 = arith.constant 0 : i32
    %c0_i32_0 = arith.constant 0 : i32
    %c0_i32_1 = arith.constant 0 : i32
    return %c0_i32, %c0_i32_0 : i32, i32
  }
  func.func @transform_4(%arg0: i32) -> (i32, i32) {
    %c0_i32 = arith.constant 0 : i32
    %c0_i32_0 = arith.constant 0 : i32
    %c0_i32_1 = arith.constant 0 : i32
    return %c0_i32, %c0_i32_0 : i32, i32
  }
  func.func @transform_5(%arg0: i32) -> (i32, i32) {
    %c0_i32 = arith.constant 0 : i32
    %c0_i32_0 = arith.constant 0 : i32
    %c0_i32_1 = arith.constant 0 : i32
    return %c0_i32, %c0_i32_0 : i32, i32
  }
  func.func @transform_6(%arg0: i32) -> (i32, i32) {
    %c0_i32 = arith.constant 0 : i32
    %c0_i32_0 = arith.constant 0 : i32
    %c0_i32_1 = arith.constant 0 : i32
    return %c0_i32, %c0_i32_0 : i32, i32
  }
  func.func @transform_7(%arg0: i32) -> (i32, i32) {
    %c0_i32 = arith.constant 0 : i32
    %c0_i32_0 = arith.constant 0 : i32
    %c0_i32_1 = arith.constant 0 : i32
    return %c0_i32, %c0_i32_0 : i32, i32
  }
  func.func @transform_8(%arg0: i32) -> (i32, i32) {
    %c0_i32 = arith.constant 0 : i32
    %c0_i32_0 = arith.constant 0 : i32
    %c0_i32_1 = arith.constant 0 : i32
    return %c0_i32, %c0_i32_0 : i32, i32
  }
  func.func @transform_9(%arg0: i32) -> (i32, i32) {
    %c0_i32 = arith.constant 0 : i32
    %c0_i32_0 = arith.constant 0 : i32
    return %arg0, %c0_i32 : i32, i32
  }
}

</mosaic_0001>

<llo_original>
// kernel: lower_layers_forward.1
$region0: #{lower_layers_forward.1}
  #allocation0 [shape = 'u32[]', space=smem, size = 0x4, offset = 0x4, fixed_abs, tag = 'smem constant byte address 0x4 - core index']
  #allocation1 [shape = 'u32[144,128]{1,0:T(1,128)}', space=vmem, size = 0x12000, scoped, tag = 'internal scratch']
  %s0 = inlined_call_operand.vmem [shape: f32[256,16], index: 0, kind: input, shape index: {}]
  %s1 = inlined_call_operand.vmem [shape: f32[16,128], index: 1, kind: input, shape index: {}]
  %s2 = inlined_call_operand.vmem [shape: f32[1,128], index: 2, kind: input, shape index: {}]
  %s3 = inlined_call_operand.vmem [shape: f32[128,128], index: 3, kind: input, shape index: {}]
  %s4 = inlined_call_operand.vmem [shape: f32[1,128], index: 4, kind: input, shape index: {}]
  %s5 = inlined_call_operand.vmem [shape: f32[128,128], index: 5, kind: input, shape index: {}]
  %s6 = inlined_call_operand.vmem [shape: f32[1,128], index: 6, kind: input, shape index: {}]
  %s7 = inlined_call_operand.vmem [shape: f32[128,128], index: 7, kind: input, shape index: {}]
  %s8 = inlined_call_operand.vmem [shape: f32[1,128], index: 8, kind: input, shape index: {}]
  %s9 = inlined_call_operand.vmem [shape: f32[256,128], index: 9, kind: output, shape index: {}]
  %s10 = sld [smem:[#allocation0]]
  $region69: #{lower_layers_forward.1} parent=0
    _
  %s12 = ssub.s32 1, %s10
  %s13 = scalar_select 0, %s12, %s10
  loop: start=0, step=1, limit=4
  $region2: #{lower_layers_forward.1} parent=0 // loop_pre_header
    _
  $region3: #{lower_layers_forward.1} parent=0 // loop_header
    %s15 = sphi 0, %s19
    %p16 = scmp.ge.s32.totalorder %s15, 4
    %s25 = sphi 0, %s27
    %s28 = sphi 0, %s25
    %s29 = sphi 0, %s28
    %s45 = sphi 0, %s29
    %s49 = sphi 0, %s49
    %s51 = sphi 0, %s49
    %s52 = sphi 0, %s51
    %s66 = sphi 0, %s52
    %s70 = sphi 0, %s70
    %s72 = sphi 0, %s70
    %s73 = sphi 0, %s72
    %s87 = sphi 0, %s73
    %s91 = sphi 0, %s91
    %s93 = sphi 0, %s91
    %s94 = sphi 0, %s93
    %s108 = sphi 0, %s94
    %s112 = sphi 0, %s112
    %s114 = sphi 0, %s112
    %s115 = sphi 0, %s114
    %s129 = sphi 0, %s115
    %s133 = sphi 0, %s133
    %s135 = sphi 0, %s133
    %s136 = sphi 0, %s135
    %s150 = sphi 0, %s136
    %s154 = sphi 0, %s154
    %s156 = sphi 0, %s154
    %s157 = sphi 0, %s156
    %s171 = sphi 0, %s157
    %s175 = sphi 0, %s175
    %s177 = sphi 0, %s175
    %s178 = sphi 0, %s177
    %s192 = sphi 0, %s178
    %s196 = sphi 0, %s196
    %s198 = sphi 0, %s196
    %s199 = sphi 0, %s198
    %s213 = sphi 0, %s199
    %s219 = sphi 0, %s221
    %s222 = sphi 0, %s219
    %s223 = sphi 0, %s222
    %s239 = sphi 0, %s223
  $region4: #{lower_layers_forward.1} parent=0 // loop_header_branch
    %18 = sbr.rel (%p16) target = $region8
  $region5: #{lower_layers_forward.1} parent=0 // loop_body
    %s20 = ssub.s32 %s15, 1
    %s21 = ssub.s32 %s15, 2
    %s22 = sadd.s32 %s15, 1
    %s23 = ssub.s32 %s15, %s22
    %p24 = scmp.eq.s32.totalorder %s23, 0
    %s26 = sadd.s32 %s25, 1
    %s27 = scalar_select %p24, %s25, %s26
    %p30 = pneg %p24
    %p31 = scmp.eq.s32.totalorder %s15, 1
    %p32 = por %p30, %p31
    %p33 = scmp.ne.s32.totalorder %s25, %s28
    %p34 = scmp.eq.s32.totalorder %s15, 0
    %p35 = por %p33, %p34
    %p36 = scmp.ne.s32.totalorder %s25, %s28
    %p37 = scmp.eq.s32.totalorder %s20, 1
    %p38 = por %p36, %p37
    %p39 = scmp.ne.s32.totalorder %s28, %s29
    %p40 = scmp.eq.s32.totalorder %s20, 0
    %p41 = por %p39, %p40
    %p42 = scmp.ne.s32.totalorder %s28, %s29
    %p43 = scmp.eq.s32.totalorder %s21, 1
    %p44 = por %p42, %p43
    %p46 = scmp.ne.s32.totalorder %s29, %s45
    %p47 = scmp.eq.s32.totalorder %s21, 0
    %p48 = por %p46, %p47
    %s50 = sadd.s32 %s49, 1
    %p53 = scmp.eq.s32.totalorder %s15, 1
    %p54 = scmp.ne.s32.totalorder %s49, %s51
    %p55 = scmp.eq.s32.totalorder %s15, 0
    %p56 = por %p54, %p55
    %p57 = scmp.ne.s32.totalorder %s49, %s51
    %p58 = scmp.eq.s32.totalorder %s20, 1
    %p59 = por %p57, %p58
    %p60 = scmp.ne.s32.totalorder %s51, %s52
    %p61 = scmp.eq.s32.totalorder %s20, 0
    %p62 = por %p60, %p61
    %p63 = scmp.ne.s32.totalorder %s51, %s52
    %p64 = scmp.eq.s32.totalorder %s21, 1
    %p65 = por %p63, %p64
    %p67 = scmp.ne.s32.totalorder %s52, %s66
    %p68 = scmp.eq.s32.totalorder %s21, 0
    %p69 = por %p67, %p68
    %s71 = sadd.s32 %s70, 1
    %p74 = scmp.eq.s32.totalorder %s15, 1
    %p75 = scmp.ne.s32.totalorder %s70, %s72
    %p76 = scmp.eq.s32.totalorder %s15, 0
    %p77 = por %p75, %p76
    %p78 = scmp.ne.s32.totalorder %s70, %s72
    %p79 = scmp.eq.s32.totalorder %s20, 1
    %p80 = por %p78, %p79
    %p81 = scmp.ne.s32.totalorder %s72, %s73
    %p82 = scmp.eq.s32.totalorder %s20, 0
    %p83 = por %p81, %p82
    %p84 = scmp.ne.s32.totalorder %s72, %s73
    %p85 = scmp.eq.s32.totalorder %s21, 1
    %p86 = por %p84, %p85
    %p88 = scmp.ne.s32.totalorder %s73, %s87
    %p89 = scmp.eq.s32.totalorder %s21, 0
    %p90 = por %p88, %p89
    %s92 = sadd.s32 %s91, 1
    %p95 = scmp.eq.s32.totalorder %s15, 1
    %p96 = scmp.ne.s32.totalorder %s91, %s93
    %p97 = scmp.eq.s32.totalorder %s15, 0
    %p98 = por %p96, %p97
    %p99 = scmp.ne.s32.totalorder %s91, %s93
    %p100 = scmp.eq.s32.totalorder %s20, 1
    %p101 = por %p99, %p100
    %p102 = scmp.ne.s32.totalorder %s93, %s94
    %p103 = scmp.eq.s32.totalorder %s20, 0
    %p104 = por %p102, %p103
    %p105 = scmp.ne.s32.totalorder %s93, %s94
    %p106 = scmp.eq.s32.totalorder %s21, 1
    %p107 = por %p105, %p106
    %p109 = scmp.ne.s32.totalorder %s94, %s108
    %p110 = scmp.eq.s32.totalorder %s21, 0
    %p111 = por %p109, %p110
    %s113 = sadd.s32 %s112, 1
    %p116 = scmp.eq.s32.totalorder %s15, 1
    %p117 = scmp.ne.s32.totalorder %s112, %s114
    %p118 = scmp.eq.s32.totalorder %s15, 0
    %p119 = por %p117, %p118
    %p120 = scmp.ne.s32.totalorder %s112, %s114
    %p121 = scmp.eq.s32.totalorder %s20, 1
    %p122 = por %p120, %p121
    %p123 = scmp.ne.s32.totalorder %s114, %s115
    %p124 = scmp.eq.s32.totalorder %s20, 0
    %p125 = por %p123, %p124
    %p126 = scmp.ne.s32.totalorder %s114, %s115
    %p127 = scmp.eq.s32.totalorder %s21, 1
    %p128 = por %p126, %p127
    %p130 = scmp.ne.s32.totalorder %s115, %s129
    %p131 = scmp.eq.s32.totalorder %s21, 0
    %p132 = por %p130, %p131
    %s134 = sadd.s32 %s133, 1
    %p137 = scmp.eq.s32.totalorder %s15, 1
    %p138 = scmp.ne.s32.totalorder %s133, %s135
    %p139 = scmp.eq.s32.totalorder %s15, 0
    %p140 = por %p138, %p139
    %p141 = scmp.ne.s32.totalorder %s133, %s135
    %p142 = scmp.eq.s32.totalorder %s20, 1
    %p143 = por %p141, %p142
    %p144 = scmp.ne.s32.totalorder %s135, %s136
    %p145 = scmp.eq.s32.totalorder %s20, 0
    %p146 = por %p144, %p145
    %p147 = scmp.ne.s32.totalorder %s135, %s136
    %p148 = scmp.eq.s32.totalorder %s21, 1
    %p149 = por %p147, %p148
    %p151 = scmp.ne.s32.totalorder %s136, %s150
    %p152 = scmp.eq.s32.totalorder %s21, 0
    %p153 = por %p151, %p152
    %s155 = sadd.s32 %s154, 1
    %p158 = scmp.eq.s32.totalorder %s15, 1
    %p159 = scmp.ne.s32.totalorder %s154, %s156
    %p160 = scmp.eq.s32.totalorder %s15, 0
    %p161 = por %p159, %p160
    %p162 = scmp.ne.s32.totalorder %s154, %s156
    %p163 = scmp.eq.s32.totalorder %s20, 1
    %p164 = por %p162, %p163
    %p165 = scmp.ne.s32.totalorder %s156, %s157
    %p166 = scmp.eq.s32.totalorder %s20, 0
    %p167 = por %p165, %p166
    %p168 = scmp.ne.s32.totalorder %s156, %s157
    %p169 = scmp.eq.s32.totalorder %s21, 1
    %p170 = por %p168, %p169
    %p172 = scmp.ne.s32.totalorder %s157, %s171
    %p173 = scmp.eq.s32.totalorder %s21, 0
    %p174 = por %p172, %p173
    %s176 = sadd.s32 %s175, 1
    %p179 = scmp.eq.s32.totalorder %s15, 1
    %p180 = scmp.ne.s32.totalorder %s175, %s177
    %p181 = scmp.eq.s32.totalorder %s15, 0
    %p182 = por %p180, %p181
    %p183 = scmp.ne.s32.totalorder %s175, %s177
    %p184 = scmp.eq.s32.totalorder %s20, 1
    %p185 = por %p183, %p184
    %p186 = scmp.ne.s32.totalorder %s177, %s178
    %p187 = scmp.eq.s32.totalorder %s20, 0
    %p188 = por %p186, %p187
    %p189 = scmp.ne.s32.totalorder %s177, %s178
    %p190 = scmp.eq.s32.totalorder %s21, 1
    %p191 = por %p189, %p190
    %p193 = scmp.ne.s32.totalorder %s178, %s192
    %p194 = scmp.eq.s32.totalorder %s21, 0
    %p195 = por %p193, %p194
    %s197 = sadd.s32 %s196, 1
    %p200 = scmp.eq.s32.totalorder %s15, 1
    %p201 = scmp.ne.s32.totalorder %s196, %s198
    %p202 = scmp.eq.s32.totalorder %s15, 0
    %p203 = por %p201, %p202
    %p204 = scmp.ne.s32.totalorder %s196, %s198
    %p205 = scmp.eq.s32.totalorder %s20, 1
    %p206 = por %p204, %p205
    %p207 = scmp.ne.s32.totalorder %s198, %s199
    %p208 = scmp.eq.s32.totalorder %s20, 0
    %p209 = por %p207, %p208
    %p210 = scmp.ne.s32.totalorder %s198, %s199
    %p211 = scmp.eq.s32.totalorder %s21, 1
    %p212 = por %p210, %p211
    %p214 = scmp.ne.s32.totalorder %s199, %s213
    %p215 = scmp.eq.s32.totalorder %s21, 0
    %p216 = por %p214, %p215
    %s217 = ssub.s32 %s15, %s22
    %p218 = scmp.eq.s32.totalorder %s217, 0
    %s220 = sadd.s32 %s219, 1
    %s221 = scalar_select %p218, %s219, %s220
    %p224 = pneg %p218
    %p225 = scmp.eq.s32.totalorder %s15, 1
    %p226 = por %p224, %p225
    %p227 = scmp.ne.s32.totalorder %s219, %s222
    %p228 = scmp.eq.s32.totalorder %s15, 0
    %p229 = por %p227, %p228
    %p230 = scmp.ne.s32.totalorder %s219, %s222
    %p231 = scmp.eq.s32.totalorder %s20, 1
    %p232 = por %p230, %p231
    %p233 = scmp.ne.s32.totalorder %s222, %s223
    %p234 = scmp.eq.s32.totalorder %s20, 0
    %p235 = por %p233, %p234
    %p236 = scmp.ne.s32.totalorder %s222, %s223
    %p237 = scmp.eq.s32.totalorder %s21, 1
    %p238 = por %p236, %p237
    %p240 = scmp.ne.s32.totalorder %s223, %s239
    %p241 = scmp.eq.s32.totalorder %s21, 0
    %p242 = por %p240, %p241
    %p243 = scmp.le.s32.totalorder 1, %s15
    %p244 = scmp.lt.s32.totalorder %s15, 3
    %p245 = pnand %p243, %p244
    %p246 = pneg %p245
    // Predicated region
    $region9: #{lower_layers_forward.1} parent=5 // pred_check
      _
    $region10: #{lower_layers_forward.1} parent=5 // pred_check_branch
      %248 = sbr.rel (%p245) target = $region12
    $region11: #{lower_layers_forward.1} parent=5 // pred_region
      %s249 = ssub.s32 %s15, 1
      // Predicated region
      $region13: #{lower_layers_forward.1} parent=11 // pred_check
        %p250 = pneg %p62
      $region14: #{lower_layers_forward.1} parent=11 // pred_check_branch
        %252 = sbr.rel (%p250) target = $region16
      $region15: #{lower_layers_forward.1} parent=11 // pred_region
        _
      $region16: #{lower_layers_forward.1} parent=11 // pred_fallthru
        _
      // Predicated region
      $region17: #{lower_layers_forward.1} parent=11 // pred_check
        %p253 = pneg %p83
      $region18: #{lower_layers_forward.1} parent=11 // pred_check_branch
        %255 = sbr.rel (%p253) target = $region20
      $region19: #{lower_layers_forward.1} parent=11 // pred_region
        _
      $region20: #{lower_layers_forward.1} parent=11 // pred_fallthru
        _
      // Predicated region
      $region21: #{lower_layers_forward.1} parent=11 // pred_check
        %p256 = pneg %p104
      $region22: #{lower_layers_forward.1} parent=11 // pred_check_branch
        %258 = sbr.rel (%p256) target = $region24
      $region23: #{lower_layers_forward.1} parent=11 // pred_region
        _
      $region24: #{lower_layers_forward.1} parent=11 // pred_fallthru
        _
      // Predicated region
      $region25: #{lower_layers_forward.1} parent=11 // pred_check
        %p259 = pneg %p125
      $region26: #{lower_layers_forward.1} parent=11 // pred_check_branch
        %261 = sbr.rel (%p259) target = $region28
      $region27: #{lower_layers_forward.1} parent=11 // pred_region
        _
      $region28: #{lower_layers_forward.1} parent=11 // pred_fallthru
        _
      // Predicated region
      $region29: #{lower_layers_forward.1} parent=11 // pred_check
        %p262 = pneg %p146
      $region30: #{lower_layers_forward.1} parent=11 // pred_check_branch
        %264 = sbr.rel (%p262) target = $region32
      $region31: #{lower_layers_forward.1} parent=11 // pred_region
        _
      $region32: #{lower_layers_forward.1} parent=11 // pred_fallthru
        _
      // Predicated region
      $region33: #{lower_layers_forward.1} parent=11 // pred_check
        %p265 = pneg %p167
      $region34: #{lower_layers_forward.1} parent=11 // pred_check_branch
        %267 = sbr.rel (%p265) target = $region36
      $region35: #{lower_layers_forward.1} parent=11 // pred_region
        _
      $region36: #{lower_layers_forward.1} parent=11 // pred_fallthru
        _
      // Predicated region
      $region37: #{lower_layers_forward.1} parent=11 // pred_check
        %p268 = pneg %p188
      $region38: #{lower_layers_forward.1} parent=11 // pred_check_branch
        %270 = sbr.rel (%p268) target = $region40
      $region39: #{lower_layers_forward.1} parent=11 // pred_region
        _
      $region40: #{lower_layers_forward.1} parent=11 // pred_fallthru
        _
      // Predicated region
      $region41: #{lower_layers_forward.1} parent=11 // pred_check
        %p271 = pneg %p209
      $region42: #{lower_layers_forward.1} parent=11 // pred_check_branch
        %273 = sbr.rel (%p271) target = $region44
      $region43: #{lower_layers_forward.1} parent=11 // pred_region
        _
      $region44: #{lower_layers_forward.1} parent=11 // pred_fallthru
        _
    $region12: #{lower_layers_forward.1} parent=5 // pred_fallthru
      _
    %p274 = scmp.lt.s32.totalorder %s15, 2
    // Predicated region
    $region45: #{lower_layers_forward.1} parent=5 // pred_check
      %p275 = pneg %p274
    $region46: #{lower_layers_forward.1} parent=5 // pred_check_branch
      %277 = sbr.rel (%p275) target = $region48
    $region47: #{lower_layers_forward.1} parent=5 // pred_region
      // Predicated region
      $region49: #{lower_layers_forward.1} parent=47 // pred_check
        %p278 = pneg %p35
      $region50: #{lower_layers_forward.1} parent=47 // pred_check_branch
        %280 = sbr.rel (%p278) target = $region52
      $region51: #{lower_layers_forward.1} parent=47 // pred_region
        %s281 = smul.u32 16, %s15
        %p282 = scmp.lt.s32.totalorder %s281, 31
        %s283 = scalar_select %p282, %s281, 31
        %s284 = smul.addr %s283, 8
        %s285 = scalar_lea.vmem %s0, %s284
        %s286 = smul.u32 16, %s15
      $region52: #{lower_layers_forward.1} parent=47 // pred_fallthru
        _
    $region48: #{lower_layers_forward.1} parent=5 // pred_fallthru
      _
    %p287 = scmp.le.s32.totalorder 1, %s15
    %p288 = scmp.lt.s32.totalorder %s15, 3
    %p289 = pnand %p287, %p288
    %p290 = pneg %p289
    // Predicated region
    $region53: #{lower_layers_forward.1} parent=5 // pred_check
      _
    $region54: #{lower_layers_forward.1} parent=5 // pred_check_branch
      %292 = sbr.rel (%p289) target = $region56
    $region55: #{lower_layers_forward.1} parent=5 // pred_region
      %s293 = ssub.s32 %s15, 1
      %s294 = smul.u32 16, %s20
      %p295 = scmp.lt.s32.totalorder %s294, 31
      %s296 = scalar_select %p295, %s294, 31
      %s297 = smul.addr %s296, 8
      %s298 = scalar_lea.vmem %s0, %s297
      %p299 = pneg %p41
      %p300 = pneg %p38
      %p301 = pneg %p62
      %p302 = pneg %p59
      %p303 = pneg %p83
      %p304 = pneg %p80
      %p305 = pneg %p104
      %p306 = pneg %p101
      %p307 = pneg %p125
      %p308 = pneg %p122
      %p309 = pneg %p146
      %p310 = pneg %p143
      %p311 = pneg %p167
      %p312 = pneg %p164
      %p313 = pneg %p188
      %p314 = pneg %p185
      %p315 = pneg %p209
      %p316 = pneg %p206
      %p317 = pneg %p235
      %p318 = pneg %p232
      %s319 = smul.u32 16, %s20
      %p320 = scmp.lt.s32.totalorder %s319, 31
      %s321 = scalar_select %p320, %s319, 31
      %s322 = smul.addr %s321, 8
      %s323 = scalar_lea.vmem %s9, %s322
      %s324 = smul.u32 16, %s20
      %p325 = scmp.lt.s32.totalorder %s324, 31
      %s326 = scalar_select %p325, %s324, 31
      %s327 = smul.addr %s326, 8
      %s328 = scalar_lea.vmem %s0, %s327
      %s329 = smul.u32 16, %s20
      %s330 = smul.u32 16, %s20
      %p331 = scmp.lt.s32.totalorder %s330, 31
      %s332 = scalar_select %p331, %s330, 31
      %s333 = smul.addr %s332, 8
      %s334 = scalar_lea.vmem %s9, %s333
      %s335 = smul.u32 16, %s20
      %v336 = vld [vmem:[%s2] sm:$0x1]
      %v337 = vld [vmem:[%s4] sm:$0x1]
      %v338 = vld [vmem:[%s6] sm:$0x1]
      %v339 = vld [vmem:[%s8] sm:$0x1]
      %v340 = vld [vmem:[%s328] sm:$0xff]
      %v341 = vld [vmem:[%s328 + $0x8] sm:$0xff]
      %v342 = vld [vmem:[%s328 + $0x10] sm:$0xff]
      %v343 = vld [vmem:[%s328 + $0x18] sm:$0xff]
      %v344 = vld [vmem:[%s328 + $0x20] sm:$0xff]
      %v345 = vld [vmem:[%s328 + $0x28] sm:$0xff]
      %v346 = vld [vmem:[%s328 + $0x30] sm:$0xff]
      %v347 = vld [vmem:[%s328 + $0x38] sm:$0xff]
      %v348 = vld [vmem:[%s328 + $0x40] sm:$0xff]
      %v349 = vld [vmem:[%s328 + $0x48] sm:$0xff]
      %v350 = vld [vmem:[%s328 + $0x50] sm:$0xff]
      %v351 = vld [vmem:[%s328 + $0x58] sm:$0xff]
      %v352 = vld [vmem:[%s328 + $0x60] sm:$0xff]
      %v353 = vld [vmem:[%s328 + $0x68] sm:$0xff]
      %v354 = vld [vmem:[%s328 + $0x70] sm:$0xff]
      %v355 = vld [vmem:[%s328 + $0x78] sm:$0xff]
      %v356 = vld [vmem:[%s1] sm:$0xff]
      %v357 = vld [vmem:[%s1 + $0x8] sm:$0xff]
      %v359 = vlaneseq
      %v360 = vshrl.u32 %v359, 7
      %v361 = vsub.s32 0, %v360
      %v362 = vrot.slane %v336, %v361
      %vm364 = vcmask 130048
      %v366 = vsel %vm364, %v340, 0
      %v369 = vsel %vm364, %v341, 0
      %v372 = vsel %vm364, %v342, 0
      %v375 = vsel %vm364, %v343, 0
      %v378 = vsel %vm364, %v344, 0
      %v381 = vsel %vm364, %v345, 0
      %v384 = vsel %vm364, %v346, 0
      %v387 = vsel %vm364, %v347, 0
      %v390 = vsel %vm364, %v348, 0
      %v393 = vsel %vm364, %v349, 0
      %v396 = vsel %vm364, %v350, 0
      %v399 = vsel %vm364, %v351, 0
      %v402 = vsel %vm364, %v352, 0
      %v405 = vsel %vm364, %v353, 0
      %v408 = vsel %vm364, %v354, 0
      %v411 = vsel %vm364, %v355, 0
      %413 = vmatprep.subr.mxu0 0.0
      %414 = vmatpush1.msra.mxu0 0.0
      %415 = vmatprep.subr.mxu0 0.0
      %416 = vmatpush1.msra.mxu0 0.0
      %417 = vmatprep.subr.mxu0 0.0
      %418 = vmatpush1.msra.mxu0 0.0
      %419 = vmatprep.subr.mxu0 0.0
      %420 = vmatpush1.msra.mxu0 0.0
      %421 = vmatprep.subr.mxu0 0.0
      %422 = vmatpush1.msra.mxu0 0.0
      %423 = vmatprep.subr.mxu0 0.0
      %424 = vmatpush1.msra.mxu0 0.0
      %425 = vmatprep.subr.mxu0 0.0
      %426 = vmatpush1.msra.mxu0 0.0
      %427 = vmatprep.subr.mxu0 0.0
      %428 = vmatpush1.msra.mxu0 0.0
      %429 = vmatprep.subr.mxu0 0.0
      %430 = vmatpush1.msra.mxu0 0.0
      %431 = vmatprep.subr.mxu0 0.0
      %432 = vmatpush1.msra.mxu0 0.0
      %433 = vmatprep.subr.mxu0 0.0
      %434 = vmatpush1.msra.mxu0 0.0
      %435 = vmatprep.subr.mxu0 0.0
      %436 = vmatpush1.msra.mxu0 0.0
      %437 = vmatprep.subr.mxu0 0.0
      %438 = vmatpush1.msra.mxu0 0.0
      %439 = vmatprep.subr.mxu0 0.0
      %440 = vmatpush1.msra.mxu0 0.0
      %441 = vmatprep.subr.mxu0 0.0
      %442 = vmatpush1.msra.mxu0 %v357
      %443 = vmatprep.subr.mxu0 0.0
      %444 = vmatpush1.msra.mxu0 %v356
      %445 = vmatprep.subr.mxu0 0.0
      %446 = vmatpush2.msra.mxu0 0.0
      %447 = vmatprep.subr.mxu0 0.0
      %448 = vmatpush2.msra.mxu0 0.0
      %449 = vmatprep.subr.mxu0 0.0
      %450 = vmatpush2.msra.mxu0 0.0
      %451 = vmatprep.subr.mxu0 0.0
      %452 = vmatpush2.msra.mxu0 0.0
      %453 = vmatprep.subr.mxu0 0.0
      %454 = vmatpush2.msra.mxu0 0.0
      %455 = vmatprep.subr.mxu0 0.0
      %456 = vmatpush2.msra.mxu0 0.0
      %457 = vmatprep.subr.mxu0 0.0
      %458 = vmatpush2.msra.mxu0 0.0
      %459 = vmatprep.subr.mxu0 0.0
      %460 = vmatpush2.msra.mxu0 0.0
      %461 = vmatprep.subr.mxu0 0.0
      %462 = vmatpush2.msra.mxu0 0.0
      %463 = vmatprep.subr.mxu0 0.0
      %464 = vmatpush2.msra.mxu0 0.0
      %465 = vmatprep.subr.mxu0 0.0
      %466 = vmatpush2.msra.mxu0 0.0
      %467 = vmatprep.subr.mxu0 0.0
      %468 = vmatpush2.msra.mxu0 0.0
      %469 = vmatprep.subr.mxu0 0.0
      %470 = vmatpush2.msra.mxu0 0.0
      %471 = vmatprep.subr.mxu0 0.0
      %472 = vmatpush2.msra.mxu0 0.0
      %473 = vmatprep.subr.mxu0 0.0
      %474 = vmatpush2.msra.mxu0 0.0
      %475 = vmatprep.subr.mxu0 0.0
      %476 = vmatpush2.msra.mxu0 0.0
      %477 = vmatprep.mubr.f32.mxu0 0.0
      %478 = vmatmul.mubr.f32.gmra.mxu0 %v366
      %v479 = vpop.f32.mrf.mxu0
      %v480 = vadd.f32 %v362, %v479
      %v481 = vpop.f32.mrf.mxu0
      %482 = vmatprep.mubr.f32.mxu0 0.0
      %483 = vmatmul.mubr.f32.gmra.mxu0 %v369
      %v484 = vpop.f32.mrf.mxu0
      %v485 = vadd.f32 %v362, %v484
      %v486 = vpop.f32.mrf.mxu0
      %487 = vmatprep.mubr.f32.mxu0 0.0
      %488 = vmatmul.mubr.f32.gmra.mxu0 %v372
      %v489 = vpop.f32.mrf.mxu0
      %v490 = vadd.f32 %v362, %v489
      %v491 = vpop.f32.mrf.mxu0
      %492 = vmatprep.mubr.f32.mxu0 0.0
      %493 = vmatmul.mubr.f32.gmra.mxu0 %v375
      %v494 = vpop.f32.mrf.mxu0
      %v495 = vadd.f32 %v362, %v494
      %v496 = vpop.f32.mrf.mxu0
      %497 = vmatprep.mubr.f32.mxu0 0.0
      %498 = vmatmul.mubr.f32.gmra.mxu0 %v378
      %v499 = vpop.f32.mrf.mxu0
      %v500 = vadd.f32 %v362, %v499
      %v501 = vpop.f32.mrf.mxu0
      %502 = vmatprep.mubr.f32.mxu0 0.0
      %503 = vmatmul.mubr.f32.gmra.mxu0 %v381
      %v504 = vpop.f32.mrf.mxu0
      %v505 = vadd.f32 %v362, %v504
      %v506 = vpop.f32.mrf.mxu0
      %507 = vmatprep.mubr.f32.mxu0 0.0
      %508 = vmatmul.mubr.f32.gmra.mxu0 %v384
      %v509 = vpop.f32.mrf.mxu0
      %v510 = vadd.f32 %v362, %v509
      %v511 = vpop.f32.mrf.mxu0
      %512 = vmatprep.mubr.f32.mxu0 0.0
      %513 = vmatmul.mubr.f32.gmra.mxu0 %v387
      %v514 = vpop.f32.mrf.mxu0
      %v515 = vadd.f32 %v362, %v514
      %v516 = vpop.f32.mrf.mxu0
      %517 = vmatprep.mubr.f32.mxu0 0.0
      %518 = vmatmul.mubr.f32.gmra.mxu0 %v390
      %v519 = vpop.f32.mrf.mxu0
      %v520 = vadd.f32 %v362, %v519
      %v521 = vpop.f32.mrf.mxu0
      %522 = vmatprep.mubr.f32.mxu0 0.0
      %523 = vmatmul.mubr.f32.gmra.mxu0 %v393
      %v524 = vpop.f32.mrf.mxu0
      %v525 = vadd.f32 %v362, %v524
      %v526 = vpop.f32.mrf.mxu0
      %527 = vmatprep.mubr.f32.mxu0 0.0
      %528 = vmatmul.mubr.f32.gmra.mxu0 %v396
      %v529 = vpop.f32.mrf.mxu0
      %v530 = vadd.f32 %v362, %v529
      %v531 = vpop.f32.mrf.mxu0
      %532 = vmatprep.mubr.f32.mxu0 0.0
      %533 = vmatmul.mubr.f32.gmra.mxu0 %v399
      %v534 = vpop.f32.mrf.mxu0
      %v535 = vadd.f32 %v362, %v534
      %v536 = vpop.f32.mrf.mxu0
      %537 = vmatprep.mubr.f32.mxu0 0.0
      %538 = vmatmul.mubr.f32.gmra.mxu0 %v402
      %v539 = vpop.f32.mrf.mxu0
      %v540 = vadd.f32 %v362, %v539
      %v541 = vpop.f32.mrf.mxu0
      %542 = vmatprep.mubr.f32.mxu0 0.0
      %543 = vmatmul.mubr.f32.gmra.mxu0 %v405
      %v544 = vpop.f32.mrf.mxu0
      %v545 = vadd.f32 %v362, %v544
      %v546 = vpop.f32.mrf.mxu0
      %547 = vmatprep.mubr.f32.mxu0 0.0
      %548 = vmatmul.mubr.f32.gmra.mxu0 %v408
      %v549 = vpop.f32.mrf.mxu0
      %v550 = vadd.f32 %v362, %v549
      %v551 = vpop.f32.mrf.mxu0
      %552 = vmatprep.mubr.f32.mxu0 0.0
      %553 = vmatmul.mubr.f32.gmra.mxu0 %v411
      %v554 = vpop.f32.mrf.mxu0
      %v555 = vadd.f32 %v362, %v554
      %v556 = vpop.f32.mrf.mxu0
      %557 = vdwg.mxu0
      %v558 = vtanh.pop %v480
      %v559 = vtanh.pop %v485
      %v560 = vtanh.pop %v490
      %v561 = vtanh.pop %v495
      %v562 = vtanh.pop %v500
      %v563 = vtanh.pop %v505
      %v564 = vtanh.pop %v510
      %v565 = vtanh.pop %v515
      %v566 = vtanh.pop %v520
      %v567 = vtanh.pop %v525
      %v568 = vtanh.pop %v530
      %v569 = vtanh.pop %v535
      %v570 = vtanh.pop %v540
      %v571 = vtanh.pop %v545
      %v572 = vtanh.pop %v550
      %v573 = vtanh.pop %v555
      %v574 = vld [vmem:[%s3] sm:$0xff]
      %v575 = vld [vmem:[%s3 + $0x8] sm:$0xff]
      %v576 = vld [vmem:[%s3 + $0x10] sm:$0xff]
      %v577 = vld [vmem:[%s3 + $0x18] sm:$0xff]
      %v578 = vld [vmem:[%s3 + $0x20] sm:$0xff]
      %v579 = vld [vmem:[%s3 + $0x28] sm:$0xff]
      %v580 = vld [vmem:[%s3 + $0x30] sm:$0xff]
      %v581 = vld [vmem:[%s3 + $0x38] sm:$0xff]
      %v582 = vld [vmem:[%s3 + $0x40] sm:$0xff]
      %v583 = vld [vmem:[%s3 + $0x48] sm:$0xff]
      %v584 = vld [vmem:[%s3 + $0x50] sm:$0xff]
      %v585 = vld [vmem:[%s3 + $0x58] sm:$0xff]
      %v586 = vld [vmem:[%s3 + $0x60] sm:$0xff]
      %v587 = vld [vmem:[%s3 + $0x68] sm:$0xff]
      %v588 = vld [vmem:[%s3 + $0x70] sm:$0xff]
      %v589 = vld [vmem:[%s3 + $0x78] sm:$0xff]
      %v591 = vlaneseq
      %v592 = vshrl.u32 %v591, 7
      %v593 = vsub.s32 0, %v592
      %v594 = vrot.slane %v337, %v593
      %596 = vmatprep.subr.mxu0 0.0
      %597 = vmatpush1.msra.mxu0 %v589
      %598 = vmatprep.subr.mxu0 0.0
      %599 = vmatpush1.msra.mxu0 %v588
      %600 = vmatprep.subr.mxu0 0.0
      %601 = vmatpush1.msra.mxu0 %v587
      %602 = vmatprep.subr.mxu0 0.0
      %603 = vmatpush1.msra.mxu0 %v586
      %604 = vmatprep.subr.mxu0 0.0
      %605 = vmatpush1.msra.mxu0 %v585
      %606 = vmatprep.subr.mxu0 0.0
      %607 = vmatpush1.msra.mxu0 %v584
      %608 = vmatprep.subr.mxu0 0.0
      %609 = vmatpush1.msra.mxu0 %v583
      %610 = vmatprep.subr.mxu0 0.0
      %611 = vmatpush1.msra.mxu0 %v582
      %612 = vmatprep.subr.mxu0 0.0
      %613 = vmatpush1.msra.mxu0 %v581
      %614 = vmatprep.subr.mxu0 0.0
      %615 = vmatpush1.msra.mxu0 %v580
      %616 = vmatprep.subr.mxu0 0.0
      %617 = vmatpush1.msra.mxu0 %v579
      %618 = vmatprep.subr.mxu0 0.0
      %619 = vmatpush1.msra.mxu0 %v578
      %620 = vmatprep.subr.mxu0 0.0
      %621 = vmatpush1.msra.mxu0 %v577
      %622 = vmatprep.subr.mxu0 0.0
      %623 = vmatpush1.msra.mxu0 %v576
      %624 = vmatprep.subr.mxu0 0.0
      %625 = vmatpush1.msra.mxu0 %v575
      %626 = vmatprep.subr.mxu0 0.0
      %627 = vmatpush1.msra.mxu0 %v574
      %628 = vmatprep.subr.mxu0 0.0
      %629 = vmatpush2.msra.mxu0 0.0
      %630 = vmatprep.subr.mxu0 0.0
      %631 = vmatpush2.msra.mxu0 0.0
      %632 = vmatprep.subr.mxu0 0.0
      %633 = vmatpush2.msra.mxu0 0.0
      %634 = vmatprep.subr.mxu0 0.0
      %635 = vmatpush2.msra.mxu0 0.0
      %636 = vmatprep.subr.mxu0 0.0
      %637 = vmatpush2.msra.mxu0 0.0
      %638 = vmatprep.subr.mxu0 0.0
      %639 = vmatpush2.msra.mxu0 0.0
      %640 = vmatprep.subr.mxu0 0.0
      %641 = vmatpush2.msra.mxu0 0.0
      %642 = vmatprep.subr.mxu0 0.0
      %643 = vmatpush2.msra.mxu0 0.0
      %644 = vmatprep.subr.mxu0 0.0
      %645 = vmatpush2.msra.mxu0 0.0
      %646 = vmatprep.subr.mxu0 0.0
      %647 = vmatpush2.msra.mxu0 0.0
      %648 = vmatprep.subr.mxu0 0.0
      %649 = vmatpush2.msra.mxu0 0.0
      %650 = vmatprep.subr.mxu0 0.0
      %651 = vmatpush2.msra.mxu0 0.0
      %652 = vmatprep.subr.mxu0 0.0
      %653 = vmatpush2.msra.mxu0 0.0
      %654 = vmatprep.subr.mxu0 0.0
      %655 = vmatpush2.msra.mxu0 0.0
      %656 = vmatprep.subr.mxu0 0.0
      %657 = vmatpush2.msra.mxu0 0.0
      %658 = vmatprep.subr.mxu0 0.0
      %659 = vmatpush2.msra.mxu0 0.0
      %660 = vmatprep.mubr.f32.mxu0 0.0
      %661 = vmatmul.mubr.f32.gmra.mxu0 %v558
      %v662 = vpop.f32.mrf.mxu0
      %v663 = vadd.f32 %v594, %v662
      %v664 = vpop.f32.mrf.mxu0
      %665 = vmatprep.mubr.f32.mxu0 0.0
      %666 = vmatmul.mubr.f32.gmra.mxu0 %v559
      %v667 = vpop.f32.mrf.mxu0
      %v668 = vadd.f32 %v594, %v667
      %v669 = vpop.f32.mrf.mxu0
      %670 = vmatprep.mubr.f32.mxu0 0.0
      %671 = vmatmul.mubr.f32.gmra.mxu0 %v560
      %v672 = vpop.f32.mrf.mxu0
      %v673 = vadd.f32 %v594, %v672
      %v674 = vpop.f32.mrf.mxu0
      %675 = vmatprep.mubr.f32.mxu0 0.0
      %676 = vmatmul.mubr.f32.gmra.mxu0 %v561
      %v677 = vpop.f32.mrf.mxu0
      %v678 = vadd.f32 %v594, %v677
      %v679 = vpop.f32.mrf.mxu0
      %680 = vmatprep.mubr.f32.mxu0 0.0
      %681 = vmatmul.mubr.f32.gmra.mxu0 %v562
      %v682 = vpop.f32.mrf.mxu0
      %v683 = vadd.f32 %v594, %v682
      %v684 = vpop.f32.mrf.mxu0
      %685 = vmatprep.mubr.f32.mxu0 0.0
      %686 = vmatmul.mubr.f32.gmra.mxu0 %v563
      %v687 = vpop.f32.mrf.mxu0
      %v688 = vadd.f32 %v594, %v687
      %v689 = vpop.f32.mrf.mxu0
      %690 = vmatprep.mubr.f32.mxu0 0.0
      %691 = vmatmul.mubr.f32.gmra.mxu0 %v564
      %v692 = vpop.f32.mrf.mxu0
      %v693 = vadd.f32 %v594, %v692
      %v694 = vpop.f32.mrf.mxu0
      %695 = vmatprep.mubr.f32.mxu0 0.0
      %696 = vmatmul.mubr.f32.gmra.mxu0 %v565
      %v697 = vpop.f32.mrf.mxu0
      %v698 = vadd.f32 %v594, %v697
      %v699 = vpop.f32.mrf.mxu0
      %700 = vmatprep.mubr.f32.mxu0 0.0
      %701 = vmatmul.mubr.f32.gmra.mxu0 %v566
      %v702 = vpop.f32.mrf.mxu0
      %v703 = vadd.f32 %v594, %v702
      %v704 = vpop.f32.mrf.mxu0
      %705 = vmatprep.mubr.f32.mxu0 0.0
      %706 = vmatmul.mubr.f32.gmra.mxu0 %v567
      %v707 = vpop.f32.mrf.mxu0
      %v708 = vadd.f32 %v594, %v707
      %v709 = vpop.f32.mrf.mxu0
      %710 = vmatprep.mubr.f32.mxu0 0.0
      %711 = vmatmul.mubr.f32.gmra.mxu0 %v568
      %v712 = vpop.f32.mrf.mxu0
      %v713 = vadd.f32 %v594, %v712
      %v714 = vpop.f32.mrf.mxu0
      %715 = vmatprep.mubr.f32.mxu0 0.0
      %716 = vmatmul.mubr.f32.gmra.mxu0 %v569
      %v717 = vpop.f32.mrf.mxu0
      %v718 = vadd.f32 %v594, %v717
      %v719 = vpop.f32.mrf.mxu0
      %720 = vmatprep.mubr.f32.mxu0 0.0
      %721 = vmatmul.mubr.f32.gmra.mxu0 %v570
      %v722 = vpop.f32.mrf.mxu0
      %v723 = vadd.f32 %v594, %v722
      %v724 = vpop.f32.mrf.mxu0
      %725 = vmatprep.mubr.f32.mxu0 0.0
      %726 = vmatmul.mubr.f32.gmra.mxu0 %v571
      %v727 = vpop.f32.mrf.mxu0
      %v728 = vadd.f32 %v594, %v727
      %v729 = vpop.f32.mrf.mxu0
      %730 = vmatprep.mubr.f32.mxu0 0.0
      %731 = vmatmul.mubr.f32.gmra.mxu0 %v572
      %v732 = vpop.f32.mrf.mxu0
      %v733 = vadd.f32 %v594, %v732
      %v734 = vpop.f32.mrf.mxu0
      %735 = vmatprep.mubr.f32.mxu0 0.0
      %736 = vmatmul.mubr.f32.gmra.mxu0 %v573
      %v737 = vpop.f32.mrf.mxu0
      %v738 = vadd.f32 %v594, %v737
      %v739 = vpop.f32.mrf.mxu0
      %740 = vdwg.mxu0
      %v741 = vtanh.pop %v663
      %v742 = vtanh.pop %v668
      %v743 = vtanh.pop %v673
      %v744 = vtanh.pop %v678
      %v745 = vtanh.pop %v683
      %v746 = vtanh.pop %v688
      %v747 = vtanh.pop %v693
      %v748 = vtanh.pop %v698
      %v749 = vtanh.pop %v703
      %v750 = vtanh.pop %v708
      %v751 = vtanh.pop %v713
      %v752 = vtanh.pop %v718
      %v753 = vtanh.pop %v723
      %v754 = vtanh.pop %v728
      %v755 = vtanh.pop %v733
      %v756 = vtanh.pop %v738
      %v757 = vld [vmem:[%s5] sm:$0xff]
      %v758 = vld [vmem:[%s5 + $0x8] sm:$0xff]
      %v759 = vld [vmem:[%s5 + $0x10] sm:$0xff]
      %v760 = vld [vmem:[%s5 + $0x18] sm:$0xff]
      %v761 = vld [vmem:[%s5 + $0x20] sm:$0xff]
      %v762 = vld [vmem:[%s5 + $0x28] sm:$0xff]
      %v763 = vld [vmem:[%s5 + $0x30] sm:$0xff]
      %v764 = vld [vmem:[%s5 + $0x38] sm:$0xff]
      %v765 = vld [vmem:[%s5 + $0x40] sm:$0xff]
      %v766 = vld [vmem:[%s5 + $0x48] sm:$0xff]
      %v767 = vld [vmem:[%s5 + $0x50] sm:$0xff]
      %v768 = vld [vmem:[%s5 + $0x58] sm:$0xff]
      %v769 = vld [vmem:[%s5 + $0x60] sm:$0xff]
      %v770 = vld [vmem:[%s5 + $0x68] sm:$0xff]
      %v771 = vld [vmem:[%s5 + $0x70] sm:$0xff]
      %v772 = vld [vmem:[%s5 + $0x78] sm:$0xff]
      %v774 = vlaneseq
      %v775 = vshrl.u32 %v774, 7
      %v776 = vsub.s32 0, %v775
      %v777 = vrot.slane %v338, %v776
      %779 = vmatprep.subr.mxu0 0.0
      %780 = vmatpush1.msra.mxu0 %v772
      %781 = vmatprep.subr.mxu0 0.0
      %782 = vmatpush1.msra.mxu0 %v771
      %783 = vmatprep.subr.mxu0 0.0
      %784 = vmatpush1.msra.mxu0 %v770
      %785 = vmatprep.subr.mxu0 0.0
      %786 = vmatpush1.msra.mxu0 %v769
      %787 = vmatprep.subr.mxu0 0.0
      %788 = vmatpush1.msra.mxu0 %v768
      %789 = vmatprep.subr.mxu0 0.0
      %790 = vmatpush1.msra.mxu0 %v767
      %791 = vmatprep.subr.mxu0 0.0
      %792 = vmatpush1.msra.mxu0 %v766
      %793 = vmatprep.subr.mxu0 0.0
      %794 = vmatpush1.msra.mxu0 %v765
      %795 = vmatprep.subr.mxu0 0.0
      %796 = vmatpush1.msra.mxu0 %v764
      %797 = vmatprep.subr.mxu0 0.0
      %798 = vmatpush1.msra.mxu0 %v763
      %799 = vmatprep.subr.mxu0 0.0
      %800 = vmatpush1.msra.mxu0 %v762
      %801 = vmatprep.subr.mxu0 0.0
      %802 = vmatpush1.msra.mxu0 %v761
      %803 = vmatprep.subr.mxu0 0.0
      %804 = vmatpush1.msra.mxu0 %v760
      %805 = vmatprep.subr.mxu0 0.0
      %806 = vmatpush1.msra.mxu0 %v759
      %807 = vmatprep.subr.mxu0 0.0
      %808 = vmatpush1.msra.mxu0 %v758
      %809 = vmatprep.subr.mxu0 0.0
      %810 = vmatpush1.msra.mxu0 %v757
      %811 = vmatprep.subr.mxu0 0.0
      %812 = vmatpush2.msra.mxu0 0.0
      %813 = vmatprep.subr.mxu0 0.0
      %814 = vmatpush2.msra.mxu0 0.0
      %815 = vmatprep.subr.mxu0 0.0
      %816 = vmatpush2.msra.mxu0 0.0
      %817 = vmatprep.subr.mxu0 0.0
      %818 = vmatpush2.msra.mxu0 0.0
      %819 = vmatprep.subr.mxu0 0.0
      %820 = vmatpush2.msra.mxu0 0.0
      %821 = vmatprep.subr.mxu0 0.0
      %822 = vmatpush2.msra.mxu0 0.0
      %823 = vmatprep.subr.mxu0 0.0
      %824 = vmatpush2.msra.mxu0 0.0
      %825 = vmatprep.subr.mxu0 0.0
      %826 = vmatpush2.msra.mxu0 0.0
      %827 = vmatprep.subr.mxu0 0.0
      %828 = vmatpush2.msra.mxu0 0.0
      %829 = vmatprep.subr.mxu0 0.0
      %830 = vmatpush2.msra.mxu0 0.0
      %831 = vmatprep.subr.mxu0 0.0
      %832 = vmatpush2.msra.mxu0 0.0
      %833 = vmatprep.subr.mxu0 0.0
      %834 = vmatpush2.msra.mxu0 0.0
      %835 = vmatprep.subr.mxu0 0.0
      %836 = vmatpush2.msra.mxu0 0.0
      %837 = vmatprep.subr.mxu0 0.0
      %838 = vmatpush2.msra.mxu0 0.0
      %839 = vmatprep.subr.mxu0 0.0
      %840 = vmatpush2.msra.mxu0 0.0
      %841 = vmatprep.subr.mxu0 0.0
      %842 = vmatpush2.msra.mxu0 0.0
      %843 = vmatprep.mubr.f32.mxu0 0.0
      %844 = vmatmul.mubr.f32.gmra.mxu0 %v741
      %v845 = vpop.f32.mrf.mxu0
      %v846 = vadd.f32 %v777, %v845
      %v847 = vpop.f32.mrf.mxu0
      %848 = vmatprep.mubr.f32.mxu0 0.0
      %849 = vmatmul.mubr.f32.gmra.mxu0 %v742
      %v850 = vpop.f32.mrf.mxu0
      %v851 = vadd.f32 %v777, %v850
      %v852 = vpop.f32.mrf.mxu0
      %853 = vmatprep.mubr.f32.mxu0 0.0
      %854 = vmatmul.mubr.f32.gmra.mxu0 %v743
      %v855 = vpop.f32.mrf.mxu0
      %v856 = vadd.f32 %v777, %v855
      %v857 = vpop.f32.mrf.mxu0
      %858 = vmatprep.mubr.f32.mxu0 0.0
      %859 = vmatmul.mubr.f32.gmra.mxu0 %v744
      %v860 = vpop.f32.mrf.mxu0
      %v861 = vadd.f32 %v777, %v860
      %v862 = vpop.f32.mrf.mxu0
      %863 = vmatprep.mubr.f32.mxu0 0.0
      %864 = vmatmul.mubr.f32.gmra.mxu0 %v745
      %v865 = vpop.f32.mrf.mxu0
      %v866 = vadd.f32 %v777, %v865
      %v867 = vpop.f32.mrf.mxu0
      %868 = vmatprep.mubr.f32.mxu0 0.0
      %869 = vmatmul.mubr.f32.gmra.mxu0 %v746
      %v870 = vpop.f32.mrf.mxu0
      %v871 = vadd.f32 %v777, %v870
      %v872 = vpop.f32.mrf.mxu0
      %873 = vmatprep.mubr.f32.mxu0 0.0
      %874 = vmatmul.mubr.f32.gmra.mxu0 %v747
      %v875 = vpop.f32.mrf.mxu0
      %v876 = vadd.f32 %v777, %v875
      %v877 = vpop.f32.mrf.mxu0
      %878 = vmatprep.mubr.f32.mxu0 0.0
      %879 = vmatmul.mubr.f32.gmra.mxu0 %v748
      %v880 = vpop.f32.mrf.mxu0
      %v881 = vadd.f32 %v777, %v880
      %v882 = vpop.f32.mrf.mxu0
      %883 = vmatprep.mubr.f32.mxu0 0.0
      %884 = vmatmul.mubr.f32.gmra.mxu0 %v749
      %v885 = vpop.f32.mrf.mxu0
      %v886 = vadd.f32 %v777, %v885
      %v887 = vpop.f32.mrf.mxu0
      %888 = vmatprep.mubr.f32.mxu0 0.0
      %889 = vmatmul.mubr.f32.gmra.mxu0 %v750
      %v890 = vpop.f32.mrf.mxu0
      %v891 = vadd.f32 %v777, %v890
      %v892 = vpop.f32.mrf.mxu0
      %893 = vmatprep.mubr.f32.mxu0 0.0
      %894 = vmatmul.mubr.f32.gmra.mxu0 %v751
      %v895 = vpop.f32.mrf.mxu0
      %v896 = vadd.f32 %v777, %v895
      %v897 = vpop.f32.mrf.mxu0
      %898 = vmatprep.mubr.f32.mxu0 0.0
      %899 = vmatmul.mubr.f32.gmra.mxu0 %v752
      %v900 = vpop.f32.mrf.mxu0
      %v901 = vadd.f32 %v777, %v900
      %v902 = vpop.f32.mrf.mxu0
      %903 = vmatprep.mubr.f32.mxu0 0.0
      %904 = vmatmul.mubr.f32.gmra.mxu0 %v753
      %v905 = vpop.f32.mrf.mxu0
      %v906 = vadd.f32 %v777, %v905
      %v907 = vpop.f32.mrf.mxu0
      %908 = vmatprep.mubr.f32.mxu0 0.0
      %909 = vmatmul.mubr.f32.gmra.mxu0 %v754
      %v910 = vpop.f32.mrf.mxu0
      %v911 = vadd.f32 %v777, %v910
      %v912 = vpop.f32.mrf.mxu0
      %913 = vmatprep.mubr.f32.mxu0 0.0
      %914 = vmatmul.mubr.f32.gmra.mxu0 %v755
      %v915 = vpop.f32.mrf.mxu0
      %v916 = vadd.f32 %v777, %v915
      %v917 = vpop.f32.mrf.mxu0
      %918 = vmatprep.mubr.f32.mxu0 0.0
      %919 = vmatmul.mubr.f32.gmra.mxu0 %v756
      %v920 = vpop.f32.mrf.mxu0
      %v921 = vadd.f32 %v777, %v920
      %v922 = vpop.f32.mrf.mxu0
      %923 = vdwg.mxu0
      %v924 = vtanh.pop %v846
      %v925 = vtanh.pop %v851
      %v926 = vtanh.pop %v856
      %v927 = vtanh.pop %v861
      %v928 = vtanh.pop %v866
      %v929 = vtanh.pop %v871
      %v930 = vtanh.pop %v876
      %v931 = vtanh.pop %v881
      %v932 = vtanh.pop %v886
      %v933 = vtanh.pop %v891
      %v934 = vtanh.pop %v896
      %v935 = vtanh.pop %v901
      %v936 = vtanh.pop %v906
      %v937 = vtanh.pop %v911
      %v938 = vtanh.pop %v916
      %v939 = vtanh.pop %v921
      %v940 = vld [vmem:[%s7] sm:$0xff]
      %v941 = vld [vmem:[%s7 + $0x8] sm:$0xff]
      %v942 = vld [vmem:[%s7 + $0x10] sm:$0xff]
      %v943 = vld [vmem:[%s7 + $0x18] sm:$0xff]
      %v944 = vld [vmem:[%s7 + $0x20] sm:$0xff]
      %v945 = vld [vmem:[%s7 + $0x28] sm:$0xff]
      %v946 = vld [vmem:[%s7 + $0x30] sm:$0xff]
      %v947 = vld [vmem:[%s7 + $0x38] sm:$0xff]
      %v948 = vld [vmem:[%s7 + $0x40] sm:$0xff]
      %v949 = vld [vmem:[%s7 + $0x48] sm:$0xff]
      %v950 = vld [vmem:[%s7 + $0x50] sm:$0xff]
      %v951 = vld [vmem:[%s7 + $0x58] sm:$0xff]
      %v952 = vld [vmem:[%s7 + $0x60] sm:$0xff]
      %v953 = vld [vmem:[%s7 + $0x68] sm:$0xff]
      %v954 = vld [vmem:[%s7 + $0x70] sm:$0xff]
      %v955 = vld [vmem:[%s7 + $0x78] sm:$0xff]
      %v957 = vlaneseq
      %v958 = vshrl.u32 %v957, 7
      %v959 = vsub.s32 0, %v958
      %v960 = vrot.slane %v339, %v959
      %962 = vmatprep.subr.mxu0 0.0
      %963 = vmatpush1.msra.mxu0 %v955
      %964 = vmatprep.subr.mxu0 0.0
      %965 = vmatpush1.msra.mxu0 %v954
      %966 = vmatprep.subr.mxu0 0.0
      %967 = vmatpush1.msra.mxu0 %v953
      %968 = vmatprep.subr.mxu0 0.0
      %969 = vmatpush1.msra.mxu0 %v952
      %970 = vmatprep.subr.mxu0 0.0
      %971 = vmatpush1.msra.mxu0 %v951
      %972 = vmatprep.subr.mxu0 0.0
      %973 = vmatpush1.msra.mxu0 %v950
      %974 = vmatprep.subr.mxu0 0.0
      %975 = vmatpush1.msra.mxu0 %v949
      %976 = vmatprep.subr.mxu0 0.0
      %977 = vmatpush1.msra.mxu0 %v948
      %978 = vmatprep.subr.mxu0 0.0
      %979 = vmatpush1.msra.mxu0 %v947
      %980 = vmatprep.subr.mxu0 0.0
      %981 = vmatpush1.msra.mxu0 %v946
      %982 = vmatprep.subr.mxu0 0.0
      %983 = vmatpush1.msra.mxu0 %v945
      %984 = vmatprep.subr.mxu0 0.0
      %985 = vmatpush1.msra.mxu0 %v944
      %986 = vmatprep.subr.mxu0 0.0
      %987 = vmatpush1.msra.mxu0 %v943
      %988 = vmatprep.subr.mxu0 0.0
      %989 = vmatpush1.msra.mxu0 %v942
      %990 = vmatprep.subr.mxu0 0.0
      %991 = vmatpush1.msra.mxu0 %v941
      %992 = vmatprep.subr.mxu0 0.0
      %993 = vmatpush1.msra.mxu0 %v940
      %994 = vmatprep.subr.mxu0 0.0
      %995 = vmatpush2.msra.mxu0 0.0
      %996 = vmatprep.subr.mxu0 0.0
      %997 = vmatpush2.msra.mxu0 0.0
      %998 = vmatprep.subr.mxu0 0.0
      %999 = vmatpush2.msra.mxu0 0.0
      %1000 = vmatprep.subr.mxu0 0.0
      %1001 = vmatpush2.msra.mxu0 0.0
      %1002 = vmatprep.subr.mxu0 0.0
      %1003 = vmatpush2.msra.mxu0 0.0
      %1004 = vmatprep.subr.mxu0 0.0
      %1005 = vmatpush2.msra.mxu0 0.0
      %1006 = vmatprep.subr.mxu0 0.0
      %1007 = vmatpush2.msra.mxu0 0.0
      %1008 = vmatprep.subr.mxu0 0.0
      %1009 = vmatpush2.msra.mxu0 0.0
      %1010 = vmatprep.subr.mxu0 0.0
      %1011 = vmatpush2.msra.mxu0 0.0
      %1012 = vmatprep.subr.mxu0 0.0
      %1013 = vmatpush2.msra.mxu0 0.0
      %1014 = vmatprep.subr.mxu0 0.0
      %1015 = vmatpush2.msra.mxu0 0.0
      %1016 = vmatprep.subr.mxu0 0.0
      %1017 = vmatpush2.msra.mxu0 0.0
      %1018 = vmatprep.subr.mxu0 0.0
      %1019 = vmatpush2.msra.mxu0 0.0
      %1020 = vmatprep.subr.mxu0 0.0
      %1021 = vmatpush2.msra.mxu0 0.0
      %1022 = vmatprep.subr.mxu0 0.0
      %1023 = vmatpush2.msra.mxu0 0.0
      %1024 = vmatprep.subr.mxu0 0.0
      %1025 = vmatpush2.msra.mxu0 0.0
      %1026 = vmatprep.mubr.f32.mxu0 0.0
      %1027 = vmatmul.mubr.f32.gmra.mxu0 %v924
      %v1028 = vpop.f32.mrf.mxu0
      %v1029 = vadd.f32 %v960, %v1028
      %v1030 = vpop.f32.mrf.mxu0
      %1031 = vmatprep.mubr.f32.mxu0 0.0
      %1032 = vmatmul.mubr.f32.gmra.mxu0 %v925
      %v1033 = vpop.f32.mrf.mxu0
      %v1034 = vadd.f32 %v960, %v1033
      %v1035 = vpop.f32.mrf.mxu0
      %1036 = vmatprep.mubr.f32.mxu0 0.0
      %1037 = vmatmul.mubr.f32.gmra.mxu0 %v926
      %v1038 = vpop.f32.mrf.mxu0
      %v1039 = vadd.f32 %v960, %v1038
      %v1040 = vpop.f32.mrf.mxu0
      %1041 = vmatprep.mubr.f32.mxu0 0.0
      %1042 = vmatmul.mubr.f32.gmra.mxu0 %v927
      %v1043 = vpop.f32.mrf.mxu0
      %v1044 = vadd.f32 %v960, %v1043
      %v1045 = vpop.f32.mrf.mxu0
      %1046 = vmatprep.mubr.f32.mxu0 0.0
      %1047 = vmatmul.mubr.f32.gmra.mxu0 %v928
      %v1048 = vpop.f32.mrf.mxu0
      %v1049 = vadd.f32 %v960, %v1048
      %v1050 = vpop.f32.mrf.mxu0
      %1051 = vmatprep.mubr.f32.mxu0 0.0
      %1052 = vmatmul.mubr.f32.gmra.mxu0 %v929
      %v1053 = vpop.f32.mrf.mxu0
      %v1054 = vadd.f32 %v960, %v1053
      %v1055 = vpop.f32.mrf.mxu0
      %1056 = vmatprep.mubr.f32.mxu0 0.0
      %1057 = vmatmul.mubr.f32.gmra.mxu0 %v930
      %v1058 = vpop.f32.mrf.mxu0
      %v1059 = vadd.f32 %v960, %v1058
      %v1060 = vpop.f32.mrf.mxu0
      %1061 = vmatprep.mubr.f32.mxu0 0.0
      %1062 = vmatmul.mubr.f32.gmra.mxu0 %v931
      %v1063 = vpop.f32.mrf.mxu0
      %v1064 = vadd.f32 %v960, %v1063
      %v1065 = vpop.f32.mrf.mxu0
      %1066 = vmatprep.mubr.f32.mxu0 0.0
      %1067 = vmatmul.mubr.f32.gmra.mxu0 %v932
      %v1068 = vpop.f32.mrf.mxu0
      %v1069 = vadd.f32 %v960, %v1068
      %v1070 = vpop.f32.mrf.mxu0
      %1071 = vmatprep.mubr.f32.mxu0 0.0
      %1072 = vmatmul.mubr.f32.gmra.mxu0 %v933
      %v1073 = vpop.f32.mrf.mxu0
      %v1074 = vadd.f32 %v960, %v1073
      %v1075 = vpop.f32.mrf.mxu0
      %1076 = vmatprep.mubr.f32.mxu0 0.0
      %1077 = vmatmul.mubr.f32.gmra.mxu0 %v934
      %v1078 = vpop.f32.mrf.mxu0
      %v1079 = vadd.f32 %v960, %v1078
      %v1080 = vpop.f32.mrf.mxu0
      %1081 = vmatprep.mubr.f32.mxu0 0.0
      %1082 = vmatmul.mubr.f32.gmra.mxu0 %v935
      %v1083 = vpop.f32.mrf.mxu0
      %v1084 = vadd.f32 %v960, %v1083
      %v1085 = vpop.f32.mrf.mxu0
      %1086 = vmatprep.mubr.f32.mxu0 0.0
      %1087 = vmatmul.mubr.f32.gmra.mxu0 %v936
      %v1088 = vpop.f32.mrf.mxu0
      %v1089 = vadd.f32 %v960, %v1088
      %v1090 = vpop.f32.mrf.mxu0
      %1091 = vmatprep.mubr.f32.mxu0 0.0
      %1092 = vmatmul.mubr.f32.gmra.mxu0 %v937
      %v1093 = vpop.f32.mrf.mxu0
      %v1094 = vadd.f32 %v960, %v1093
      %v1095 = vpop.f32.mrf.mxu0
      %1096 = vmatprep.mubr.f32.mxu0 0.0
      %1097 = vmatmul.mubr.f32.gmra.mxu0 %v938
      %v1098 = vpop.f32.mrf.mxu0
      %v1099 = vadd.f32 %v960, %v1098
      %v1100 = vpop.f32.mrf.mxu0
      %1101 = vmatprep.mubr.f32.mxu0 0.0
      %1102 = vmatmul.mubr.f32.gmra.mxu0 %v939
      %v1103 = vpop.f32.mrf.mxu0
      %v1104 = vadd.f32 %v960, %v1103
      %v1105 = vpop.f32.mrf.mxu0
      %1106 = vdwg.mxu0
      %v1107 = vtanh.pop %v1029
      %v1108 = vtanh.pop %v1034
      %v1109 = vtanh.pop %v1039
      %v1110 = vtanh.pop %v1044
      %v1111 = vtanh.pop %v1049
      %v1112 = vtanh.pop %v1054
      %v1113 = vtanh.pop %v1059
      %v1114 = vtanh.pop %v1064
      %v1115 = vtanh.pop %v1069
      %v1116 = vtanh.pop %v1074
      %v1117 = vtanh.pop %v1079
      %v1118 = vtanh.pop %v1084
      %v1119 = vtanh.pop %v1089
      %v1120 = vtanh.pop %v1094
      %v1121 = vtanh.pop %v1099
      %v1122 = vtanh.pop %v1104
      %1123 = vst [vmem:[%s334] sm:$0xff] %v1107
      %1124 = vst [vmem:[%s334 + $0x8] sm:$0xff] %v1108
      %1125 = vst [vmem:[%s334 + $0x10] sm:$0xff] %v1109
      %1126 = vst [vmem:[%s334 + $0x18] sm:$0xff] %v1110
      %1127 = vst [vmem:[%s334 + $0x20] sm:$0xff] %v1111
      %1128 = vst [vmem:[%s334 + $0x28] sm:$0xff] %v1112
      %1129 = vst [vmem:[%s334 + $0x30] sm:$0xff] %v1113
      %1130 = vst [vmem:[%s334 + $0x38] sm:$0xff] %v1114
      %1131 = vst [vmem:[%s334 + $0x40] sm:$0xff] %v1115
      %1132 = vst [vmem:[%s334 + $0x48] sm:$0xff] %v1116
      %1133 = vst [vmem:[%s334 + $0x50] sm:$0xff] %v1117
      %1134 = vst [vmem:[%s334 + $0x58] sm:$0xff] %v1118
      %1135 = vst [vmem:[%s334 + $0x60] sm:$0xff] %v1119
      %1136 = vst [vmem:[%s334 + $0x68] sm:$0xff] %v1120
      %1137 = vst [vmem:[%s334 + $0x70] sm:$0xff] %v1121
      %1138 = vst [vmem:[%s334 + $0x78] sm:$0xff] %v1122
      %s1139 = smul.u32 16, %s20
      %p1140 = scmp.lt.s32.totalorder %s1139, 31
      %s1141 = scalar_select %p1140, %s1139, 31
      %s1142 = smul.addr %s1141, 8
      %s1143 = scalar_lea.vmem %s9, %s1142
      // Predicated region
      $region57: #{lower_layers_forward.1} parent=55 // pred_check
        %p1144 = pneg %p232
      $region58: #{lower_layers_forward.1} parent=55 // pred_check_branch
        %1146 = sbr.rel (%p1144) target = $region60
      $region59: #{lower_layers_forward.1} parent=55 // pred_region
        %s1147 = smul.u32 16, %s20
      $region60: #{lower_layers_forward.1} parent=55 // pred_fallthru
        _
    $region56: #{lower_layers_forward.1} parent=5 // pred_fallthru
      _
    %p1148 = scmp.le.s32.totalorder 2, %s15
    // Predicated region
    $region61: #{lower_layers_forward.1} parent=5 // pred_check
      %p1149 = pneg %p1148
    $region62: #{lower_layers_forward.1} parent=5 // pred_check_branch
      %1151 = sbr.rel (%p1149) target = $region64
    $region63: #{lower_layers_forward.1} parent=5 // pred_region
      %s1152 = ssub.s32 %s15, 2
      // Predicated region
      $region65: #{lower_layers_forward.1} parent=63 // pred_check
        %p1153 = pneg %p238
      $region66: #{lower_layers_forward.1} parent=63 // pred_check_branch
        %1155 = sbr.rel (%p1153) target = $region68
      $region67: #{lower_layers_forward.1} parent=63 // pred_region
        %s1156 = smul.u32 16, %s21
        %p1157 = scmp.lt.s32.totalorder %s1156, 31
        %s1158 = scalar_select %p1157, %s1156, 31
        %s1159 = smul.addr %s1158, 8
        %s1160 = scalar_lea.vmem %s9, %s1159
      $region68: #{lower_layers_forward.1} parent=63 // pred_fallthru
        _
    $region64: #{lower_layers_forward.1} parent=5 // pred_fallthru
      _
  $region6: #{lower_layers_forward.1} parent=0 // loop_footer
    %s19 = sadd.s32 1, %s15
  $region7: #{lower_layers_forward.1} parent=0 // loop_footer_branch
    %14 = sbr.rel target = $region3
  $region8: #{lower_layers_forward.1} parent=0 // loop_exit
    _

</llo_original>
